<compile_context>
chip_gen: v5e
topology: v5e:2x2
jax: 0.10.0
libtpu: 0.0.40
codegen_flags: <defaults>
</compile_context>

<pallas_src>
import functools

import jax
import jax.numpy as jnp
from jax.experimental import pallas as pl
from jax.experimental.pallas import tpu as pltpu


# --------------------------------------------------------------------------- #
# Kernel body
# --------------------------------------------------------------------------- #
def _rmsnorm_kernel(x_ref, w_ref, o_ref, *, eps, inv_hidden):
    # x_ref: (tm, H) row tile; w_ref: (1, H) broadcast weight; o_ref: (tm, H).
    x = x_ref[...].astype(jnp.float32)                            # single f32 upcast, reused
    var = jnp.sum(x * x, axis=-1, keepdims=True) * inv_hidden     # (tm, 1) mean of squares
    inv = jax.lax.rsqrt(var + eps)                                # (tm, 1) EUP rsqrt
    normed = (x * inv).astype(x_ref.dtype)                        # torch: .to(input_dtype)
    o_ref[...] = (w_ref[...] * normed).astype(o_ref.dtype)        # weight * normed


# --------------------------------------------------------------------------- #
# Tiling helpers
# --------------------------------------------------------------------------- #
def _sublane_align(itemsize):
    # Dense sublane packing: 8 rows for 32-bit, 16 for 16-bit, 32 for 8-bit.
    return {4: 8, 2: 16, 1: 32}.get(int(itemsize), 8)


def _tpu_vmem_and_cores():
    """Best-effort query of per-TensorCore VMEM bytes and TCs per chip."""
    vmem = 128 * 1024 * 1024   # v5e/v6e default
    cores = 1
    try:
        info = pltpu.get_tpu_info()
        v = getattr(info, "vmem_capacity_bytes", None)
        if v:
            vmem = int(v)
        for attr in ("num_cores", "num_tensorcores", "cores_per_chip",
                     "num_cores_per_chip", "tensorcores_per_chip"):
            c = getattr(info, attr, None)
            if c:
                cores = int(c)
                break
    except Exception:
        pass
    # Heuristic: 64 MiB per-TC VMEM implies v7x, which has 2 TCs per chip.
    if cores == 1 and vmem <= 96 * 1024 * 1024:
        cores = 2
    return vmem, cores


def _per_row_footprint_bytes(hidden, in_itemsize, out_itemsize):
    """True double-buffered VMEM bytes per tile row (2*in + 2*out + f32 temp)."""
    per_row = 2 * hidden * in_itemsize + 2 * hidden * out_itemsize
    if in_itemsize < 4:
        per_row += hidden * 4   # f32 upcast temporary (no-op for f32 inputs)
    return per_row


def _choose_row_tile(rows, hidden, in_itemsize, out_itemsize, *,
                     tile_budget_bytes, min_grid_steps=1, max_rows=8192):
    """Largest sublane-aligned row tile whose double-buffered footprint fits."""
    align = _sublane_align(in_itemsize)
    per_row = _per_row_footprint_bytes(hidden, in_itemsize, out_itemsize)

    tm = (tile_budget_bytes // per_row) // align * align
    tm = max(align, min(int(tm), max_rows))

    rows_aligned = ((rows + align - 1) // align) * align
    tm = min(tm, rows_aligned)

    # Guarantee enough grid steps to shard across TensorCores (v7x megacore),
    # but only when the problem actually has that many aligned row groups.
    if min_grid_steps > 1 and rows_aligned >= align * min_grid_steps:
        tm_cap = max(align, (rows_aligned // (align * min_grid_steps)) * align)
        tm = min(tm, tm_cap)

    return tm


# --------------------------------------------------------------------------- #
# Public wrapper
# --------------------------------------------------------------------------- #
def rmsnorm(hidden_states, weight, eps=1e-6, out_dtype=None):
    """RMSNorm over the last axis of `hidden_states` using a Pallas TPU kernel.

    `out_dtype=None` (default) matches torch's promotion exactly
    (result_type(weight.dtype, input_dtype)). Passing e.g. out_dtype=bf16 is an
    opt-in fast path that halves output HBM traffic for bf16 activations.
    """
    orig_shape = hidden_states.shape
    hidden = int(orig_shape[-1])
    rows = 1
    for d in orig_shape[:-1]:
        rows *= int(d)

    x2d = hidden_states.reshape(rows, hidden)
    w2d = weight.reshape(1, hidden)

    in_dtype = x2d.dtype
    if out_dtype is None:
        out_dtype = jnp.result_type(weight.dtype, in_dtype)   # torch promotion
    out_dtype = jnp.dtype(out_dtype)

    in_itemsize = jnp.dtype(in_dtype).itemsize
    out_itemsize = out_dtype.itemsize
    w_itemsize = jnp.dtype(weight.dtype).itemsize

    # ---- generation-aware budgets ------------------------------------------
    phys_vmem, num_cores = _tpu_vmem_and_cores()
    vmem_cap = (phys_vmem * 3) // 4                      # ~96 MiB v5e/v6e, ~48 MiB v7x
    tile_budget = min(40 * 1024 * 1024,
                      max(vmem_cap - 2 * 1024 * 1024, 8 * 1024 * 1024))
    min_grid_steps = 4 * num_cores if num_cores > 1 else 1   # >=8 steps on v7x

    tm = _choose_row_tile(rows, hidden, in_itemsize, out_itemsize,
                          tile_budget_bytes=tile_budget,
                          min_grid_steps=min_grid_steps)
    grid = (pl.cdiv(rows, tm),)

    # ---- scoped-VMEM limit: actual footprint + weight buffers + margin ------
    per_row = _per_row_footprint_bytes(hidden, in_itemsize, out_itemsize)
    est_vmem = tm * per_row + 2 * hidden * w_itemsize
    vmem_limit = int(min(vmem_cap,
                         max(est_vmem + (1 << 20), 16 * 1024 * 1024)))

    cost = pl.CostEstimate(
        flops=int(4 * rows * hidden),            # square, reduce, scale, weight-mul
        transcendentals=int(rows),               # one rsqrt per row
        bytes_accessed=int(rows * hidden * (in_itemsize + out_itemsize)
                           + hidden * w_itemsize),
    )

    out2d = pl.pallas_call(
        functools.partial(_rmsnorm_kernel,
                          eps=float(eps), inv_hidden=1.0 / float(hidden)),
        out_shape=jax.ShapeDtypeStruct((rows, hidden), out_dtype),
        grid_spec=pltpu.PrefetchScalarGridSpec(
            num_scalar_prefetch=0,
            grid=grid,
            in_specs=[
                pl.BlockSpec((tm, hidden), lambda i: (i, 0)),   # row tile of x
                pl.BlockSpec((1, hidden), lambda i: (0, 0)),    # weight, fetched once
            ],
            out_specs=pl.BlockSpec((tm, hidden), lambda i: (i, 0)),
        ),
        compiler_params=pltpu.CompilerParams(
            dimension_semantics=("parallel",),   # rows independent; shards TCs on v7x
            vmem_limit_bytes=vmem_limit,
        ),
        cost_estimate=cost,
    )(x2d, w2d)

    return out2d.reshape(orig_shape[:-1] + (hidden,))


# --------------------------------------------------------------------------- #
# Pure-JAX reference mirroring the PyTorch module
# --------------------------------------------------------------------------- #
def rmsnorm_ref(hidden_states, weight, eps=1e-6):
    input_dtype = hidden_states.dtype
    x = hidden_states.astype(jnp.float32)
    variance = jnp.mean(x * x, axis=-1, keepdims=True)
    x = x * jax.lax.rsqrt(variance + eps)
    return weight * x.astype(input_dtype)


if __name__ == "__main__":
    key = jax.random.PRNGKey(0)

    # --- Test 1: f32, evenly divisible rows (main path) -----------------------
    batch, seq, hidden = 2, 8, 128
    x = jax.random.normal(key, (batch, seq, hidden), dtype=jnp.float32)
    weight = jnp.ones((hidden,), dtype=jnp.float32)   # nn.Parameter(torch.ones(hidden_size))

    out = jax.block_until_ready(rmsnorm(x, weight, eps=1e-6))
    ref = rmsnorm_ref(x, weight, eps=1e-6)
    assert out.shape == x.shape
    assert out.dtype == jnp.result_type(weight.dtype, x.dtype)
    assert jnp.allclose(out, ref, atol=1e-5, rtol=1e-5)

    # --- Test 2: bf16 input, ragged row count (exercises cdiv padding path) ---
    b2, s2, h2 = 3, 7, 256
    x2 = jax.random.normal(jax.random.PRNGKey(1), (b2, s2, h2), dtype=jnp.bfloat16)
    w2 = jnp.ones((h2,), dtype=jnp.float32)
    out2 = jax.block_until_ready(rmsnorm(x2, w2, eps=1e-6))
    ref2 = rmsnorm_ref(x2, w2, eps=1e-6)
    assert out2.shape == x2.shape
    assert out2.dtype == ref2.dtype
    assert jnp.allclose(out2.astype(jnp.float32), ref2.astype(jnp.float32),
                        atol=1e-2, rtol=1e-2)

    # --- Test 3: opt-in bf16-output fast path (semantics check vs bf16 ref) ---
    out3 = jax.block_until_ready(rmsnorm(x2, w2, eps=1e-6, out_dtype=jnp.bfloat16))
    assert out3.dtype == jnp.bfloat16
    assert jnp.allclose(out3.astype(jnp.float32), ref2.astype(jnp.float32),
                        atol=2e-2, rtol=2e-2)

    print("KERNEL_OK")
</pallas_src>

<mosaic_0001>
module attributes {stable_mosaic.version = 11 : i64} {
  func.func @_rmsnorm_kernel(%arg0: i32, %arg1: memref<16x128xf32, #tpu.memory_space<vmem>>, %arg2: memref<1x128xf32, #tpu.memory_space<vmem>>, %arg3: memref<16x128xf32, #tpu.memory_space<vmem>>) attributes {dimension_semantics = [#tpu.dimension_semantics<parallel>], iteration_bounds = array<i64: 1>, scalar_prefetch = 0 : i64, scratch_operands = 0 : i64, tpu.core_type = #tpu.core_type<tc>, window_params = [{transform_indices = @transform_0, window_bounds = array<i64: 16, 128>}, {pipeline_mode = #tpu.pipeline_mode<synchronous>, transform_indices = @transform_1, window_bounds = array<i64: 1, 128>}, {transform_indices = @transform_2, window_bounds = array<i64: 16, 128>}]} {
    %c0 = arith.constant 0 : index
    %c0_0 = arith.constant 0 : index
    %0 = vector.load %arg1[%c0, %c0_0] : memref<16x128xf32, #tpu.memory_space<vmem>>, vector<16x128xf32>
    %1 = arith.mulf %0, %0 : vector<16x128xf32>
    %cst = arith.constant dense<0.000000e+00> : vector<16xf32>
    %2 = vector.multi_reduction <add>, %1, %cst [1] : vector<16x128xf32> to vector<16xf32>
    %3 = vector.shape_cast %2 : vector<16xf32> to vector<16x1xf32>
    %cst_1 = arith.constant 7.812500e-03 : f32
    %4 = vector.broadcast %cst_1 : f32 to vector<16x1xf32>
    %5 = arith.mulf %3, %4 : vector<16x1xf32>
    %cst_2 = arith.constant 9.99999997E-7 : f32
    %6 = vector.broadcast %cst_2 : f32 to vector<16x1xf32>
    %7 = arith.addf %5, %6 : vector<16x1xf32>
    %8 = math.rsqrt %7 : vector<16x1xf32>
    %9 = vector.broadcast %8 : vector<16x1xf32> to vector<16x128xf32>
    %10 = arith.mulf %0, %9 : vector<16x128xf32>
    %c0_3 = arith.constant 0 : index
    %c0_4 = arith.constant 0 : index
    %11 = vector.load %arg2[%c0_3, %c0_4] : memref<1x128xf32, #tpu.memory_space<vmem>>, vector<1x128xf32>
    %12 = vector.broadcast %11 : vector<1x128xf32> to vector<16x128xf32>
    %13 = arith.mulf %12, %10 : vector<16x128xf32>
    %c0_5 = arith.constant 0 : index
    %c0_6 = arith.constant 0 : index
    %14 = vector.load %arg3[%c0_5, %c0_6] : memref<16x128xf32, #tpu.memory_space<vmem>>, vector<16x128xf32>
    tpu.vector_store %arg3[%c0_5, %c0_6], %13 {strides = array<i32>} : memref<16x128xf32, #tpu.memory_space<vmem>>, vector<16x128xf32>,
    return
  }
  func.func @transform_0(%arg0: i32) -> (i32, i32) {
    %c0_i32 = arith.constant 0 : i32
    %c0_i32_0 = arith.constant 0 : i32
    return %arg0, %c0_i32 : i32, i32
  }
  func.func @transform_1(%arg0: i32) -> (i32, i32) {
    %c0_i32 = arith.constant 0 : i32
    %c0_i32_0 = arith.constant 0 : i32
    %c0_i32_1 = arith.constant 0 : i32
    return %c0_i32, %c0_i32_0 : i32, i32
  }
  func.func @transform_2(%arg0: i32) -> (i32, i32) {
    %c0_i32 = arith.constant 0 : i32
    %c0_i32_0 = arith.constant 0 : i32
    return %arg0, %c0_i32 : i32, i32
  }
}

</mosaic_0001>

<llo_original>
// kernel: tpu_custom_call.1
$region0: #{tpu_custom_call.1}
  #allocation0 [shape = 'u32[]', space=smem, size = 0x4, offset = 0x4, fixed_abs, tag = 'smem constant byte address 0x4 - core index']
  #allocation1 [shape = 'u32[72,128]{1,0:T(1,128)}', space=vmem, size = 0x9000, scoped, tag = 'internal scratch']
  %s0 = inlined_call_operand.hbm [shape: f32[16,128], index: 0, kind: input, shape index: {}]
  %s1 = inlined_call_operand.hbm [shape: f32[1,128], index: 1, kind: input, shape index: {}]
  %s2 = inlined_call_operand.hbm [shape: f32[16,128], index: 2, kind: output, shape index: {}]
  %s3 = sld [smem:[#allocation0]]
  $region26: #{tpu_custom_call.1} parent=0
    _
  %s5 = ssub.s32 1, %s3
  %s6 = scalar_select 0, %s5, %s3
  $region1: #{tpu_custom_call.1} parent=0
    #allocation2 [shape = 'u8[8192]{0}', space=vmem, size = 0x2000, scoped, tag = 'input window, operand 0, single buffered']
    #allocation3 [shape = 's32[1]{0}', space=sflag, size = 0x4, scoped, tag = 'scoped memory for tpu_custom_call.1']
    #allocation4 [shape = 's32[1]{0}', space=sflag, size = 0x4, scoped, tag = 'scoped memory for tpu_custom_call.1']
    #allocation5 [shape = 'u8[512]{0}', space=vmem, size = 0x400, scoped, tag = 'input window, operand 1, single buffered']
    #allocation6 [shape = 's32[1]{0}', space=sflag, size = 0x4, scoped, tag = 'scoped memory for tpu_custom_call.1']
    #allocation7 [shape = 'u8[8192]{0}', space=vmem, size = 0x2000, scoped, tag = 'output window, operand 0, single buffered']
    %7 = vsyncpa [#allocation3], 0
    %8 = vsyncpa [#allocation6], 0
    %9 = vsyncpa [#allocation4], 0
    // Predicated region
    $region2: #{tpu_custom_call.1} parent=1 // pred_check
      _
    $region3: #{tpu_custom_call.1} parent=1 // pred_check_branch
      %11 = sbr.rel (0) target = $region5
    $region4: #{tpu_custom_call.1} parent=1 // pred_region
      %13 = vsyncadd [#allocation3], 0
      %s14 = sshll.u32 %s0, 4
      %s15 = int_to_ptr.hbm [resolvable:$true] %s14
      %s16 = sshll.u32 [#allocation2], 4
      %s17 = int_to_ptr.vmem [resolvable:$true] %s16
      %22 = dma.hbm_to_vmem [thread:$0]  %s15, 256, %s17, [#allocation3], 128, 128, 8
    $region5: #{tpu_custom_call.1} parent=1 // pred_fallthru
      _
    // Predicated region
    $region6: #{tpu_custom_call.1} parent=1 // pred_check
      _
    $region7: #{tpu_custom_call.1} parent=1 // pred_check_branch
      %24 = sbr.rel (0) target = $region9
    $region8: #{tpu_custom_call.1} parent=1 // pred_region
      %26 = vsyncadd [#allocation6], 0
      %s28 = sshll.u32 %s1, 4
      %s29 = int_to_ptr.hbm [resolvable:$true] %s28
      %s30 = sshll.u32 [#allocation5], 4
      %s31 = int_to_ptr.vmem [resolvable:$true] %s30
      %33 = dma.hbm_to_vmem [thread:$0]  %s29, 16, %s31, [#allocation6]
    $region9: #{tpu_custom_call.1} parent=1 // pred_fallthru
      _
    // Predicated region
    $region10: #{tpu_custom_call.1} parent=1 // pred_check
      _
    $region11: #{tpu_custom_call.1} parent=1 // pred_check_branch
      %35 = sbr.rel (0) target = $region13
    $region12: #{tpu_custom_call.1} parent=1 // pred_region
      %37 = dma.done [#allocation3], 256
    $region13: #{tpu_custom_call.1} parent=1 // pred_fallthru
      _
    // Predicated region
    $region14: #{tpu_custom_call.1} parent=1 // pred_check
      _
    $region15: #{tpu_custom_call.1} parent=1 // pred_check_branch
      %39 = sbr.rel (0) target = $region17
    $region16: #{tpu_custom_call.1} parent=1 // pred_region
      %41 = dma.done [#allocation6], 16
    $region17: #{tpu_custom_call.1} parent=1 // pred_fallthru
      _
    %v42 = vld [vmem:[#allocation2] sm:$0xff]
    %v43 = vld [vmem:[#allocation2 + $0x8] sm:$0xff]
    %v44 = vmul.f32 %v42, %v42
    %v45 = vmul.f32 %v43, %v43
    %46 = vadd.xlane.f32.xlu0 %v44
    %v47 = vpop.xlane.xlu0 %46
    %48 = vadd.xlane.f32.xlu0 %v45
    %v49 = vpop.xlane.xlu0 %48
    %v50 = vmul.f32 %v47, 0.0078125
    %v51 = vmul.f32 %v49, 0.0078125
    %v52 = vadd.f32 %v50, 1e-06
    %v53 = vadd.f32 %v51, 1e-06
    %v54 = vrsqrt.pop %v52
    %v55 = vmul.f32 %v54, %v52
    %v56 = vmul.f32 %v55, %v54
    %v57 = vmul.f32 0.5, %v56
    %v58 = vsub.f32 1.5, %v57
    %v59 = vmul.f32 %v54, %v58
    %vm60 = vweird.f32 %v52
    %vm61 = vweird.f32 %v54
    %vm62 = vmor %vm60, %vm61
    %v63 = vsel %vm62, %v54, %v59
    %v64 = vrsqrt.pop %v53
    %v65 = vmul.f32 %v64, %v53
    %v66 = vmul.f32 %v65, %v64
    %v67 = vmul.f32 0.5, %v66
    %v68 = vsub.f32 1.5, %v67
    %v69 = vmul.f32 %v64, %v68
    %vm70 = vweird.f32 %v53
    %vm71 = vweird.f32 %v64
    %vm72 = vmor %vm70, %vm71
    %v73 = vsel %vm72, %v64, %v69
    %v74 = vmul.f32 %v42, %v63
    %v75 = vmul.f32 %v43, %v73
    %v76 = vld [vmem:[#allocation5] sm:$0x1]
    %v78 = vperm.slane %v76, 0
    %v80 = vmul.f32 %v78, %v74
    %v81 = vmul.f32 %v78, %v75
    %82 = vst [vmem:[#allocation7] sm:$0xff] %v80
    %83 = vst [vmem:[#allocation7 + $0x8] sm:$0xff] %v81
    // Predicated region
    $region18: #{tpu_custom_call.1} parent=1 // pred_check
      _
    $region19: #{tpu_custom_call.1} parent=1 // pred_check_branch
      %85 = sbr.rel (0) target = $region21
    $region20: #{tpu_custom_call.1} parent=1 // pred_region
      %87 = vsyncadd [#allocation4], 0
      %s88 = sshll.u32 [#allocation7], 4
      %s89 = int_to_ptr.vmem [resolvable:$true] %s88
      %s90 = sshll.u32 %s2, 4
      %s91 = int_to_ptr.hbm [resolvable:$true] %s90
      %96 = dma.vmem_to_hbm [thread:$0]  %s89, 256, %s91, [#allocation4], 128, 128, 8
    $region21: #{tpu_custom_call.1} parent=1 // pred_fallthru
      _
    // Predicated region
    $region22: #{tpu_custom_call.1} parent=1 // pred_check
      _
    $region23: #{tpu_custom_call.1} parent=1 // pred_check_branch
      %98 = sbr.rel (0) target = $region25
    $region24: #{tpu_custom_call.1} parent=1 // pred_region
      %100 = dma.done [#allocation4], 256
    $region25: #{tpu_custom_call.1} parent=1 // pred_fallthru
      _
    %101 = vsyncpa [#allocation3], 1
    %102 = vsyncpa [#allocation6], 1
    %103 = vsyncpa [#allocation4], 1

</llo_original>
